<compile_context>
chip_gen: v6e
topology: v6e:2x2x1
jax: 0.10.0
libtpu: 0.0.40
codegen_flags: <defaults>
</compile_context>

<pallas_src>
import functools

import jax
import jax.numpy as jnp
import numpy as np
from jax.experimental import pallas as pl
from jax.experimental.pallas import tpu as pltpu


def _attn_head_kernel(head_size, padded_head, batch_block,
                      x_ref, wqkv_ref, bqkv_ref, o_ref):
    rows, _ = x_ref.shape                 # rows = batch_block * seq
    seq = rows // batch_block
    hp = padded_head
    scale = 1.0 / (head_size ** 0.5)      # scale uses the REAL head size

    # Fused QKV projection: bf16 operands (pre-cast in the wrapper), f32
    # accumulation on the MXU, bias added in f32.
    qkv = jnp.dot(x_ref[...], wqkv_ref[...],
                  preferred_element_type=jnp.float32) + bqkv_ref[...]

    # 128-lane-aligned segment slices (padding guarantees alignment); fold the
    # softmax scale into Q.  Leading-dim reshapes only regroup sublane rows.
    q = (qkv[:, 0 * hp:1 * hp] * scale).reshape(batch_block, seq, hp)
    k = qkv[:, 1 * hp:2 * hp].reshape(batch_block, seq, hp)
    v = qkv[:, 2 * hp:3 * hp].reshape(batch_block, seq, hp)

    # Scores: contract the last dims directly (no materialised k transpose).
    # Zero-padded columns of q/k contribute nothing to the dot product.
    s = jnp.einsum("bqh,bkh->bqk",
                   q.astype(jnp.bfloat16), k.astype(jnp.bfloat16),
                   preferred_element_type=jnp.float32)

    # Numerically stable softmax, kept in f32; reciprocal goes to the EUP.
    s = s - jnp.max(s, axis=-1, keepdims=True)
    p = jnp.exp(s)
    p = p * pl.reciprocal(jnp.sum(p, axis=-1, keepdims=True), approx=True)

    # PV matmul: N = padded_head = 128 lanes -> lane-dense output store.
    out = jnp.einsum("bqk,bkh->bqh",
                     p.astype(jnp.bfloat16), v.astype(jnp.bfloat16),
                     preferred_element_type=jnp.float32)
    o_ref[...] = out.reshape(rows, hp).astype(o_ref.dtype)


def attention_head(x, wq, bq, wk, bk, wv, bv, head_size,
                   out_dtype=jnp.float32):
    B, S, D = x.shape
    H = head_size
    # Pad each Q/K/V segment to a 128-lane boundary (see header comment).
    HP = max(128, pl.cdiv(H, 128) * 128)

    def pad_w(w):
        return jnp.pad(w, ((0, 0), (0, HP - H)))

    def pad_b(b):
        return jnp.pad(b, (0, HP - H))

    w_qkv = jnp.concatenate([pad_w(wq), pad_w(wk), pad_w(wv)],
                            axis=1).astype(jnp.bfloat16)            # (D, 3*HP)
    b_qkv = jnp.concatenate([pad_b(bq), pad_b(bk), pad_b(bv)]
                            ).reshape(1, 3 * HP).astype(jnp.float32)

    # Wrapper-side flatten + bf16 cast of the dominant input stream.
    x2d = x.reshape(B * S, D).astype(jnp.bfloat16)                   # (B*S, D)

    # ---- batch-block selection -------------------------------------------
    def _block_bytes(bt):
        rows = bt * S
        x_blk = rows * D * 2                       # bf16 input block
        o_blk = rows * HP * 4                      # f32 output block
        w_blk = D * 3 * HP * 2 + 3 * HP * 4        # resident fused weights+bias
        tmp = rows * 3 * HP * 4                    # qkv (f32)
        tmp += 3 * rows * HP * 4                   # q/k/v temporaries
        tmp += 2 * bt * S * S * 4                  # scores + probs (f32)
        return 2 * (x_blk + o_blk) + w_blk + tmp   # in/out double-buffered

    VMEM_BUDGET = 24 << 20  # headroom under v7x's 32 MiB default scoped VMEM

    bt = B
    # 2-way split only when each half still keeps the MXU M dim well fed
    # (worth it for v7x's two TensorCores; a harmless big-block loop on 1-TC
    # v5e/v6e).  Never split just to create grid steps.
    if B % 2 == 0 and (B // 2) * S >= 512 and ((B // 2) * S) % 8 == 0:
        bt = B // 2
    # Shrink further only if the block would exceed the VMEM budget.
    while bt > 1 and _block_bytes(bt) > VMEM_BUDGET:
        cand = bt - 1
        while cand > 1 and (B % cand != 0 or (cand * S) % 8 != 0):
            cand -= 1
        bt = cand
    grid = (B // bt,)

    kernel = functools.partial(_attn_head_kernel, H, HP, bt)

    out_padded = pl.pallas_call(
        kernel,
        out_shape=jax.ShapeDtypeStruct((B * S, HP), out_dtype),
        grid_spec=pltpu.PrefetchScalarGridSpec(
            num_scalar_prefetch=0,
            grid=grid,
            in_specs=[
                pl.BlockSpec((bt * S, D), lambda i: (i, 0)),     # x row block
                pl.BlockSpec((D, 3 * HP), lambda i: (0, 0)),     # fused Wqkv
                pl.BlockSpec((1, 3 * HP), lambda i: (0, 0)),     # fused bqkv
            ],
            out_specs=pl.BlockSpec((bt * S, HP), lambda i: (i, 0)),
        ),
        compiler_params=pltpu.CompilerParams(
            dimension_semantics=("parallel",)),
    )(x2d, w_qkv, b_qkv)

    # Drop the lane padding and restore (B, S, H) outside the kernel.
    return out_padded[:, :H].reshape(B, S, H)


def attention_head_ref(x, wq, bq, wk, bk, wv, bv, head_size):
    q = x @ wq + bq
    k = x @ wk + bk
    v = x @ wv + bv
    a = jnp.einsum("bqd,bkd->bqk", q, k) / (head_size ** 0.5)
    a = jax.nn.softmax(a, axis=-1)
    return jnp.einsum("bqk,bkd->bqd", a, v)


if __name__ == "__main__":
    B, S, d_model, head_size = 2, 8, 32, 16

    key = jax.random.PRNGKey(0)
    kx, kq, kbq, kk, kbk, kvk, kbv = jax.random.split(key, 7)

    x = jax.random.normal(kx, (B, S, d_model), dtype=jnp.float32)
    # Deterministic synthetic parameters (nn.Linear shapes, pre-transposed).
    wq = jax.random.normal(kq, (d_model, head_size), dtype=jnp.float32) * 0.1
    bq = jax.random.normal(kbq, (head_size,), dtype=jnp.float32) * 0.1
    wk = jax.random.normal(kk, (d_model, head_size), dtype=jnp.float32) * 0.1
    bk = jax.random.normal(kbk, (head_size,), dtype=jnp.float32) * 0.1
    wv = jax.random.normal(kvk, (d_model, head_size), dtype=jnp.float32) * 0.1
    bv = jax.random.normal(kbv, (head_size,), dtype=jnp.float32) * 0.1

    out = attention_head(x, wq, bq, wk, bk, wv, bv, head_size)
    out = jax.block_until_ready(out)

    ref = attention_head_ref(x, wq, bq, wk, bk, wv, bv, head_size)
    assert out.shape == (B, S, head_size)
    # bf16 MXU operands (f32 accumulation) + approx reciprocal vs. pure-f32 ref.
    np.testing.assert_allclose(np.asarray(out), np.asarray(ref),
                               rtol=5e-2, atol=5e-2)

    print("KERNEL_OK")
</pallas_src>

<mosaic_0001>
module attributes {stable_mosaic.version = 11 : i64} {
  func.func @_attn_head_kernel(%arg0: i32, %arg1: memref<16x32xbf16, #tpu.memory_space<vmem>>, %arg2: memref<32x384xbf16, #tpu.memory_space<vmem>>, %arg3: memref<1x384xf32, #tpu.memory_space<vmem>>, %arg4: memref<16x128xf32, #tpu.memory_space<vmem>>) attributes {dimension_semantics = [#tpu.dimension_semantics<parallel>], iteration_bounds = array<i64: 1>, scalar_prefetch = 0 : i64, scratch_operands = 0 : i64, tpu.core_type = #tpu.core_type<tc>, window_params = [{transform_indices = @transform_0, window_bounds = array<i64: 16, 32>}, {pipeline_mode = #tpu.pipeline_mode<synchronous>, transform_indices = @transform_1, window_bounds = array<i64: 32, 384>}, {pipeline_mode = #tpu.pipeline_mode<synchronous>, transform_indices = @transform_2, window_bounds = array<i64: 1, 384>}, {transform_indices = @transform_3, window_bounds = array<i64: 16, 128>}]} {
    %c0 = arith.constant 0 : index
    %c0_0 = arith.constant 0 : index
    %0 = vector.load %arg1[%c0, %c0_0] : memref<16x32xbf16, #tpu.memory_space<vmem>>, vector<16x32xbf16>
    %c0_1 = arith.constant 0 : index
    %c0_2 = arith.constant 0 : index
    %1 = vector.load %arg2[%c0_1, %c0_2] : memref<32x384xbf16, #tpu.memory_space<vmem>>, vector<32x384xbf16>
    %cst = arith.constant dense<0.000000e+00> : vector<16x384xf32>
    %2 = tpu.matmul %0, %1, %cst {dimension_numbers = #tpu.dot_dimension_numbers<[1], [0], [0], [1], [0, 0, 1, 1], [], []>} : vector<16x32xbf16>, vector<32x384xbf16>, vector<16x384xf32> -> vector<16x384xf32>
    %c0_3 = arith.constant 0 : index
    %c0_4 = arith.constant 0 : index
    %3 = vector.load %arg3[%c0_3, %c0_4] : memref<1x384xf32, #tpu.memory_space<vmem>>, vector<1x384xf32>
    %4 = vector.broadcast %3 : vector<1x384xf32> to vector<16x384xf32>
    %5 = arith.addf %2, %4 : vector<16x384xf32>
    %6 = vector.extract_strided_slice %5 {offsets = [0, 0], sizes = [16, 128], strides = [1, 1]} : vector<16x384xf32> to vector<16x128xf32>
    %cst_5 = arith.constant 2.500000e-01 : f32
    %7 = vector.broadcast %cst_5 : f32 to vector<16x128xf32>
    %8 = arith.mulf %6, %7 : vector<16x128xf32>
    %9 = vector.shape_cast %8 : vector<16x128xf32> to vector<2x8x128xf32>
    %10 = vector.extract_strided_slice %5 {offsets = [0, 128], sizes = [16, 128], strides = [1, 1]} : vector<16x384xf32> to vector<16x128xf32>
    %11 = vector.shape_cast %10 : vector<16x128xf32> to vector<2x8x128xf32>
    %12 = vector.extract_strided_slice %5 {offsets = [0, 256], sizes = [16, 128], strides = [1, 1]} : vector<16x384xf32> to vector<16x128xf32>
    %13 = vector.shape_cast %12 : vector<16x128xf32> to vector<2x8x128xf32>
    %14 = arith.truncf %9 : vector<2x8x128xf32> to vector<2x8x128xbf16>
    %15 = arith.truncf %11 : vector<2x8x128xf32> to vector<2x8x128xbf16>
    "tpu.trace_start"() <{level = 10 : i32, message = "bqh,bkh->bqk"}> : () -> ()
    %cst_6 = arith.constant dense<0.000000e+00> : vector<2x8x8xf32>
    %16 = tpu.matmul %14, %15, %cst_6 {dimension_numbers = #tpu.dot_dimension_numbers<[2], [2], [1], [1], [0, 0, 0, 1, 1, 1], [0], [0]>} : vector<2x8x128xbf16>, vector<2x8x128xbf16>, vector<2x8x8xf32> -> vector<2x8x8xf32>
    "tpu.trace_stop"() : () -> ()
    %cst_7 = arith.constant dense<0xFF800000> : vector<2x8xf32>
    %17 = vector.multi_reduction <maximumf>, %16, %cst_7 [2] : vector<2x8x8xf32> to vector<2x8xf32>
    %18 = vector.shape_cast %17 : vector<2x8xf32> to vector<2x8x1xf32>
    %19 = vector.broadcast %18 : vector<2x8x1xf32> to vector<2x8x8xf32>
    %20 = arith.subf %16, %19 : vector<2x8x8xf32>
    %21 = math.exp %20 : vector<2x8x8xf32>
    %cst_8 = arith.constant dense<0.000000e+00> : vector<2x8xf32>
    %22 = vector.multi_reduction <add>, %21, %cst_8 [2] : vector<2x8x8xf32> to vector<2x8xf32>
    %23 = vector.shape_cast %22 : vector<2x8xf32> to vector<2x8x1xf32>
    %24 = tpu.reciprocal %23 {approx = true} : vector<2x8x1xf32> -> vector<2x8x1xf32>
    %25 = vector.broadcast %24 : vector<2x8x1xf32> to vector<2x8x8xf32>
    %26 = arith.mulf %21, %25 : vector<2x8x8xf32>
    %27 = arith.truncf %26 : vector<2x8x8xf32> to vector<2x8x8xbf16>
    %28 = arith.truncf %13 : vector<2x8x128xf32> to vector<2x8x128xbf16>
    "tpu.trace_start"() <{level = 10 : i32, message = "bqk,bkh->bqh"}> : () -> ()
    %cst_9 = arith.constant dense<0.000000e+00> : vector<2x8x128xf32>
    %29 = tpu.matmul %27, %28, %cst_9 {dimension_numbers = #tpu.dot_dimension_numbers<[2], [1], [1], [2], [0, 0, 0, 1, 1, 2], [0], [0]>} : vector<2x8x8xbf16>, vector<2x8x128xbf16>, vector<2x8x128xf32> -> vector<2x8x128xf32>
    "tpu.trace_stop"() : () -> ()
    %30 = vector.shape_cast %29 : vector<2x8x128xf32> to vector<16x128xf32>
    %c0_10 = arith.constant 0 : index
    %c0_11 = arith.constant 0 : index
    %31 = vector.load %arg4[%c0_10, %c0_11] : memref<16x128xf32, #tpu.memory_space<vmem>>, vector<16x128xf32>
    tpu.vector_store %arg4[%c0_10, %c0_11], %30 {strides = array<i32>} : memref<16x128xf32, #tpu.memory_space<vmem>>, vector<16x128xf32>,
    return
  }
  func.func @transform_0(%arg0: i32) -> (i32, i32) {
    %c0_i32 = arith.constant 0 : i32
    %c0_i32_0 = arith.constant 0 : i32
    return %arg0, %c0_i32 : i32, i32
  }
  func.func @transform_1(%arg0: i32) -> (i32, i32) {
    %c0_i32 = arith.constant 0 : i32
    %c0_i32_0 = arith.constant 0 : i32
    %c0_i32_1 = arith.constant 0 : i32
    return %c0_i32, %c0_i32_0 : i32, i32
  }
  func.func @transform_2(%arg0: i32) -> (i32, i32) {
    %c0_i32 = arith.constant 0 : i32
    %c0_i32_0 = arith.constant 0 : i32
    %c0_i32_1 = arith.constant 0 : i32
    return %c0_i32, %c0_i32_0 : i32, i32
  }
  func.func @transform_3(%arg0: i32) -> (i32, i32) {
    %c0_i32 = arith.constant 0 : i32
    %c0_i32_0 = arith.constant 0 : i32
    return %arg0, %c0_i32 : i32, i32
  }
}

</mosaic_0001>

<llo_original>
// kernel: tpu_custom_call.1
$region0: #{tpu_custom_call.1}
  #allocation0 [shape = 'u32[]', space=smem, size = 0x4, offset = 0x4, fixed_abs, tag = 'smem constant byte address 0x4 - core index']
  #allocation1 [shape = 'u32[144,128]{1,0:T(1,128)}', space=vmem, size = 0x12000, scoped, tag = 'internal scratch']
  %s0 = inlined_call_operand.hbm [shape: bf16[16,32], index: 0, kind: input, shape index: {}]
  %s1 = inlined_call_operand.hbm [shape: bf16[32,384], index: 1, kind: input, shape index: {}]
  %s2 = inlined_call_operand.vmem [shape: f32[1,384], index: 2, kind: input, shape index: {}]
  %s3 = inlined_call_operand.hbm [shape: f32[16,128], index: 3, kind: output, shape index: {}]
  %s4 = sld [smem:[#allocation0]]
  $region30: #{tpu_custom_call.1} parent=0
    _
  %s6 = ssub.s32 1, %s4
  %s7 = scalar_select 0, %s6, %s4
  $region1: #{tpu_custom_call.1} parent=0
    #allocation2 [shape = 'u8[4096]{0}', space=vmem, size = 0x1000, scoped, tag = 'input window, operand 0, single buffered']
    #allocation3 [shape = 's32[1]{0}', space=sflag, size = 0x4, scoped, tag = 'scoped memory for tpu_custom_call.1']
    #allocation4 [shape = 's32[1]{0}', space=sflag, size = 0x4, scoped, tag = 'scoped memory for tpu_custom_call.1']
    #allocation5 [shape = 'u8[24576]{0}', space=vmem, size = 0x6000, scoped, tag = 'input window, operand 1, single buffered']
    #allocation6 [shape = 's32[1]{0}', space=sflag, size = 0x4, scoped, tag = 'scoped memory for tpu_custom_call.1']
    #allocation7 [shape = 'u8[8192]{0}', space=vmem, size = 0x2000, scoped, tag = 'output window, operand 0, single buffered']
    %8 = vsyncpa [#allocation3], 0
    %9 = vsyncpa [#allocation6], 0
    %10 = vsyncpa [#allocation4], 0
    // Predicated region
    $region2: #{tpu_custom_call.1} parent=1 // pred_check
      _
    $region3: #{tpu_custom_call.1} parent=1 // pred_check_branch
      %12 = sbr.rel (0) target = $region5
    $region4: #{tpu_custom_call.1} parent=1 // pred_region
      %s14 = ssub.s32 128, 128
      %15 = vsyncadd [#allocation3], %s14
      %s16 = sshll.u32 [#allocation2], 4
      %s17 = int_to_ptr.vmem [resolvable:$true] %s16
      %22 = dma.hbm_to_vmem [thread:$0]  %s0, 128, %s17, [#allocation3], 64, 64, 4
    $region5: #{tpu_custom_call.1} parent=1 // pred_fallthru
      _
    // Predicated region
    $region6: #{tpu_custom_call.1} parent=1 // pred_check
      _
    $region7: #{tpu_custom_call.1} parent=1 // pred_check_branch
      %24 = sbr.rel (0) target = $region9
    $region8: #{tpu_custom_call.1} parent=1 // pred_region
      %s26 = ssub.s32 768, 768
      %27 = vsyncadd [#allocation6], %s26
      %s28 = sshll.u32 [#allocation5], 4
      %s29 = int_to_ptr.vmem [resolvable:$true] %s28
      %34 = dma.hbm_to_vmem [thread:$0]  %s1, 768, %s29, [#allocation6], 192, 192, 12
    $region9: #{tpu_custom_call.1} parent=1 // pred_fallthru
      _
    // Predicated region
    $region10: #{tpu_custom_call.1} parent=1 // pred_check
      _
    $region11: #{tpu_custom_call.1} parent=1 // pred_check_branch
      %36 = sbr.rel (0) target = $region13
    $region12: #{tpu_custom_call.1} parent=1 // pred_region
      _
    $region13: #{tpu_custom_call.1} parent=1 // pred_fallthru
      _
    // Predicated region
    $region14: #{tpu_custom_call.1} parent=1 // pred_check
      _
    $region15: #{tpu_custom_call.1} parent=1 // pred_check_branch
      %38 = sbr.rel (0) target = $region17
    $region16: #{tpu_custom_call.1} parent=1 // pred_region
      %39 = dma.done [#allocation3], 128
    $region17: #{tpu_custom_call.1} parent=1 // pred_fallthru
      _
    // Predicated region
    $region18: #{tpu_custom_call.1} parent=1 // pred_check
      _
    $region19: #{tpu_custom_call.1} parent=1 // pred_check_branch
      %41 = sbr.rel (0) target = $region21
    $region20: #{tpu_custom_call.1} parent=1 // pred_region
      %42 = dma.done [#allocation6], 768
    $region21: #{tpu_custom_call.1} parent=1 // pred_fallthru
      _
    %v44 = vld [vmem:[#allocation2] sm:$0xf]
    %v45 = vld [vmem:[#allocation2 + $0x4] sm:$0xf]
    %v46 = vld [vmem:[#allocation5] sm:$0xff]
    %v47 = vld [vmem:[#allocation5 + $0x8] sm:$0xf]
    %v48 = vld [vmem:[#allocation5 + $0xc] sm:$0xff]
    %v49 = vld [vmem:[#allocation5 + $0x14] sm:$0xf]
    %v50 = vld [vmem:[#allocation5 + $0x18] sm:$0xff]
    %v51 = vld [vmem:[#allocation5 + $0x20] sm:$0xf]
    %v52 = vld [vmem:[#allocation5 + $0x24] sm:$0xff]
    %v53 = vld [vmem:[#allocation5 + $0x2c] sm:$0xf]
    %v54 = vld [vmem:[%s2] sm:$0x7]
    %v56 = vlaneseq
    %v57 = vshrl.u32 %v56, 7
    %v58 = vsub.s32 0, %v57
    %v59 = vrot.slane %v54, %v58
    %v60 = vlaneseq
    %v61 = vshrl.u32 %v60, 7
    %v62 = vsub.s32 1, %v61
    %v63 = vrot.slane %v54, %v62
    %v64 = vlaneseq
    %v65 = vshrl.u32 %v64, 7
    %v66 = vsub.s32 2, %v65
    %v67 = vrot.slane %v54, %v66
    %v73 = vunpack.c.l.b16 %v44
    %v74 = vunpack.c.l.b16 %v45
    %v75 = vpack.c.b16 %v74, %v73
    %v84 = vunpack.c.l.b16 %v46
    %v85 = vunpack.c.h.b16 %v46
    %v86 = vunpack.c.l.b16 %v47
    %v87 = vunpack.c.l.b16 %v48
    %v88 = vunpack.c.h.b16 %v48
    %v89 = vunpack.c.l.b16 %v49
    %v90 = vunpack.c.l.b16 %v50
    %v91 = vunpack.c.h.b16 %v50
    %v92 = vunpack.c.l.b16 %v51
    %v93 = vunpack.c.l.b16 %v52
    %v94 = vunpack.c.h.b16 %v52
    %v95 = vunpack.c.l.b16 %v53
    %v96 = vpack.c.b16 %v87, %v84
    %v97 = vpack.c.b16 %v88, %v85
    %v98 = vpack.c.b16 %v89, %v86
    %v99 = vpack.c.b16 %v93, %v90
    %v100 = vpack.c.b16 %v94, %v91
    %v101 = vpack.c.b16 %v95, %v92
    %vm108 = vcmask 261120
    %v110 = vsel %vm108, %v75, 0
    %112 = vmatprep.subr.bf16.mxu0 0
    %113 = vmatpush1.bf16.msra.mxu0 0
    %114 = vmatprep.subr.bf16.mxu0 0
    %115 = vmatpush1.bf16.msra.mxu0 0
    %116 = vmatprep.subr.bf16.mxu0 0
    %117 = vmatpush1.bf16.msra.mxu0 0
    %118 = vmatprep.subr.bf16.mxu0 0
    %119 = vmatpush1.bf16.msra.mxu0 0
    %120 = vmatprep.subr.bf16.mxu0 0
    %121 = vmatpush1.bf16.msra.mxu0 0
    %122 = vmatprep.subr.bf16.mxu0 0
    %123 = vmatpush1.bf16.msra.mxu0 0
    %124 = vmatprep.subr.bf16.mxu0 %v100
    %125 = vmatpush1.bf16.msra.mxu0 %v99
    %126 = vmatprep.subr.bf16.mxu0 %v97
    %127 = vmatpush1.bf16.msra.mxu0 %v96
    %128 = vmatprep.subr.bf16.mxu0 0
    %129 = vmatpush2.bf16.msra.mxu0 0
    %130 = vmatprep.subr.bf16.mxu0 0
    %131 = vmatpush2.bf16.msra.mxu0 0
    %132 = vmatprep.subr.bf16.mxu0 0
    %133 = vmatpush2.bf16.msra.mxu0 0
    %134 = vmatprep.subr.bf16.mxu0 0
    %135 = vmatpush2.bf16.msra.mxu0 0
    %136 = vmatprep.subr.bf16.mxu0 0
    %137 = vmatpush2.bf16.msra.mxu0 0
    %138 = vmatprep.subr.bf16.mxu0 0
    %139 = vmatpush2.bf16.msra.mxu0 0
    %140 = vmatprep.subr.bf16.mxu0 0
    %141 = vmatpush2.bf16.msra.mxu0 0
    %142 = vmatprep.subr.bf16.mxu0 0
    %143 = vmatpush2.bf16.msra.mxu0 0
    %144 = vmatprep.mubr.bf16.mxu0 0
    %145 = vmatmul.mubr.bf16.gmra.mxu0 %v110
    %v146 = vpop.f32.mrf.mxu0
    %v147 = vadd.f32 %v59, %v146
    %v148 = vpop.f32.mrf.mxu0
    %v149 = vadd.f32 %v63, %v148
    %v150 = vpop.f32.mrf.mxu0
    %v151 = vadd.f32 %v59, %v150
    %v152 = vpop.f32.mrf.mxu0
    %v153 = vadd.f32 %v63, %v152
    %154 = vdwg.mxu0
    %155 = vmatprep.subr.bf16.mxu0 0
    %156 = vmatpush1.bf16.msra.mxu0 0
    %157 = vmatprep.subr.bf16.mxu0 0
    %158 = vmatpush1.bf16.msra.mxu0 0
    %159 = vmatprep.subr.bf16.mxu0 0
    %160 = vmatpush1.bf16.msra.mxu0 0
    %161 = vmatprep.subr.bf16.mxu0 0
    %162 = vmatpush1.bf16.msra.mxu0 0
    %163 = vmatprep.subr.bf16.mxu0 0
    %164 = vmatpush1.bf16.msra.mxu0 0
    %165 = vmatprep.subr.bf16.mxu0 0
    %166 = vmatpush1.bf16.msra.mxu0 0
    %167 = vmatprep.subr.bf16.mxu0 0
    %168 = vmatpush1.bf16.msra.mxu0 %v101
    %169 = vmatprep.subr.bf16.mxu0 0
    %170 = vmatpush1.bf16.msra.mxu0 %v98
    %171 = vmatprep.subr.bf16.mxu0 0
    %172 = vmatpush2.bf16.msra.mxu0 0
    %173 = vmatprep.subr.bf16.mxu0 0
    %174 = vmatpush2.bf16.msra.mxu0 0
    %175 = vmatprep.subr.bf16.mxu0 0
    %176 = vmatpush2.bf16.msra.mxu0 0
    %177 = vmatprep.subr.bf16.mxu0 0
    %178 = vmatpush2.bf16.msra.mxu0 0
    %179 = vmatprep.subr.bf16.mxu0 0
    %180 = vmatpush2.bf16.msra.mxu0 0
    %181 = vmatprep.subr.bf16.mxu0 0
    %182 = vmatpush2.bf16.msra.mxu0 0
    %183 = vmatprep.subr.bf16.mxu0 0
    %184 = vmatpush2.bf16.msra.mxu0 0
    %185 = vmatprep.subr.bf16.mxu0 0
    %186 = vmatpush2.bf16.msra.mxu0 0
    %187 = vmatprep.mubr.bf16.mxu0 0
    %188 = vmatmul.mubr.bf16.gmra.mxu0 %v110
    %v189 = vpop.f32.mrf.mxu0
    %v190 = vadd.f32 %v67, %v189
    %v191 = vpop.f32.mrf.mxu0
    %v192 = vpop.f32.mrf.mxu0
    %v193 = vadd.f32 %v67, %v192
    %v194 = vpop.f32.mrf.mxu0
    %195 = vdwg.mxu0
    %v196 = vmul.f32 %v147, 0.25
    %v197 = vmul.f32 %v151, 0.25
    %v198 = vpack.c.bf16 %v196, %v196
    %v199 = vpack.c.bf16 %v197, %v197
    %v200 = vpack.c.bf16 %v149, %v149
    %v201 = vpack.c.bf16 %v153, %v153
    %202 = vmatprep.subr.bf16.mxu0 0
    %203 = vmatpush1.bf16.xpose.msra.mxu0 0
    %204 = vmatprep.subr.bf16.mxu0 0
    %205 = vmatpush1.bf16.xpose.msra.mxu0 0
    %206 = vmatprep.subr.bf16.mxu0 0
    %207 = vmatpush1.bf16.xpose.msra.mxu0 0
    %208 = vmatprep.subr.bf16.mxu0 0
    %209 = vmatpush1.bf16.xpose.msra.mxu0 0
    %210 = vmatprep.subr.bf16.mxu0 0
    %211 = vmatpush1.bf16.xpose.msra.mxu0 0
    %212 = vmatprep.subr.bf16.mxu0 0
    %213 = vmatpush1.bf16.xpose.msra.mxu0 0
    %214 = vmatprep.subr.bf16.mxu0 0
    %215 = vmatpush1.bf16.xpose.msra.mxu0 0
    %216 = vmatprep.subr.bf16.mxu0 0
    %217 = vmatpush1.bf16.xpose.msra.mxu0 %v200
    %218 = vmatprep.subr.bf16.mxu0 0
    %219 = vmatpush2.bf16.xpose.msra.mxu0 0
    %220 = vmatprep.subr.bf16.mxu0 0
    %221 = vmatpush2.bf16.xpose.msra.mxu0 0
    %222 = vmatprep.subr.bf16.mxu0 0
    %223 = vmatpush2.bf16.xpose.msra.mxu0 0
    %224 = vmatprep.subr.bf16.mxu0 0
    %225 = vmatpush2.bf16.xpose.msra.mxu0 0
    %226 = vmatprep.subr.bf16.mxu0 0
    %227 = vmatpush2.bf16.xpose.msra.mxu0 0
    %228 = vmatprep.subr.bf16.mxu0 0
    %229 = vmatpush2.bf16.xpose.msra.mxu0 0
    %230 = vmatprep.subr.bf16.mxu0 0
    %231 = vmatpush2.bf16.xpose.msra.mxu0 0
    %232 = vmatprep.subr.bf16.mxu0 0
    %233 = vmatpush2.bf16.xpose.msra.mxu0 0
    %234 = vmatprep.mubr.bf16.mxu0 0
    %235 = vmatmul.mubr.bf16.gmra.mxu0 %v198
    %v236 = vpop.f32.mrf.mxu0
    %v237 = vadd.f32 0.0, %v236
    %v238 = vpop.f32.mrf.mxu0
    %v239 = vpop.f32.mrf.mxu0
    %v240 = vpop.f32.mrf.mxu0
    %241 = vdwg.mxu0
    %242 = vmatprep.subr.bf16.mxu0 0
    %243 = vmatpush1.bf16.xpose.msra.mxu0 0
    %244 = vmatprep.subr.bf16.mxu0 0
    %245 = vmatpush1.bf16.xpose.msra.mxu0 0
    %246 = vmatprep.subr.bf16.mxu0 0
    %247 = vmatpush1.bf16.xpose.msra.mxu0 0
    %248 = vmatprep.subr.bf16.mxu0 0
    %249 = vmatpush1.bf16.xpose.msra.mxu0 0
    %250 = vmatprep.subr.bf16.mxu0 0
    %251 = vmatpush1.bf16.xpose.msra.mxu0 0
    %252 = vmatprep.subr.bf16.mxu0 0
    %253 = vmatpush1.bf16.xpose.msra.mxu0 0
    %254 = vmatprep.subr.bf16.mxu0 0
    %255 = vmatpush1.bf16.xpose.msra.mxu0 0
    %256 = vmatprep.subr.bf16.mxu0 0
    %257 = vmatpush1.bf16.xpose.msra.mxu0 %v201
    %258 = vmatprep.subr.bf16.mxu0 0
    %259 = vmatpush2.bf16.xpose.msra.mxu0 0
    %260 = vmatprep.subr.bf16.mxu0 0
    %261 = vmatpush2.bf16.xpose.msra.mxu0 0
    %262 = vmatprep.subr.bf16.mxu0 0
    %263 = vmatpush2.bf16.xpose.msra.mxu0 0
    %264 = vmatprep.subr.bf16.mxu0 0
    %265 = vmatpush2.bf16.xpose.msra.mxu0 0
    %266 = vmatprep.subr.bf16.mxu0 0
    %267 = vmatpush2.bf16.xpose.msra.mxu0 0
    %268 = vmatprep.subr.bf16.mxu0 0
    %269 = vmatpush2.bf16.xpose.msra.mxu0 0
    %270 = vmatprep.subr.bf16.mxu0 0
    %271 = vmatpush2.bf16.xpose.msra.mxu0 0
    %272 = vmatprep.subr.bf16.mxu0 0
    %273 = vmatpush2.bf16.xpose.msra.mxu0 0
    %274 = vmatprep.mubr.bf16.mxu0 0
    %275 = vmatmul.mubr.bf16.gmra.mxu0 %v199
    %v276 = vpop.f32.mrf.mxu0
    %v277 = vadd.f32 0.0, %v276
    %v278 = vpop.f32.mrf.mxu0
    %v279 = vpop.f32.mrf.mxu0
    %v280 = vpop.f32.mrf.mxu0
    %281 = vdwg.mxu0
    %vm282 = vcmask 64512
    %v283 = vsel %vm282, %v237, -inf
    %284 = vmax.xlane.f32.xlu0 %v283
    %v285 = vpop.xlane.xlu0 %284
    %v286 = vsel %vm282, %v277, -inf
    %287 = vmax.xlane.f32.xlu0 %v286
    %v288 = vpop.xlane.xlu0 %287
    %v289 = vsub.f32 %v237, %v285
    %v290 = vsub.f32 %v277, %v288
    %v291 = vmul.f32 %v289, 1.442695
    %v292 = vpow.pop %v291
    %v293 = vmul.f32 %v290, 1.442695
    %v294 = vpow.pop %v293
    %v295 = vsel %vm282, %v292, 0.0
    %296 = vadd.xlane.f32.xlu0 %v295
    %v297 = vpop.xlane.xlu0 %296
    %v298 = vsel %vm282, %v294, 0.0
    %299 = vadd.xlane.f32.xlu0 %v298
    %v300 = vpop.xlane.xlu0 %299
    %v301 = vrcp.pop %v297
    %v302 = vrcp.pop %v300
    %v303 = vmul.f32 %v292, %v301
    %v304 = vmul.f32 %v294, %v302
    %v305 = vpack.c.bf16 %v303, %v303
    %v306 = vpack.c.bf16 %v304, %v304
    %v307 = vpack.c.bf16 %v190, %v190
    %v308 = vpack.c.bf16 %v193, %v193
    %v310 = vsel %vm282, %v305, 0
    %vm312 = vcmask 1043456
    %v314 = vsel %vm312, %v307, 0
    %316 = vmatprep.subr.bf16.mxu0 0
    %317 = vmatpush1.bf16.msra.mxu0 0
    %318 = vmatprep.subr.bf16.mxu0 0
    %319 = vmatpush1.bf16.msra.mxu0 0
    %320 = vmatprep.subr.bf16.mxu0 0
    %321 = vmatpush1.bf16.msra.mxu0 0
    %322 = vmatprep.subr.bf16.mxu0 0
    %323 = vmatpush1.bf16.msra.mxu0 0
    %324 = vmatprep.subr.bf16.mxu0 0
    %325 = vmatpush1.bf16.msra.mxu0 0
    %326 = vmatprep.subr.bf16.mxu0 0
    %327 = vmatpush1.bf16.msra.mxu0 0
    %328 = vmatprep.subr.bf16.mxu0 0
    %329 = vmatpush1.bf16.msra.mxu0 0
    %330 = vmatprep.subr.bf16.mxu0 0
    %331 = vmatpush1.bf16.msra.mxu0 %v314
    %332 = vmatprep.subr.bf16.mxu0 0
    %333 = vmatpush2.bf16.msra.mxu0 0
    %334 = vmatprep.subr.bf16.mxu0 0
    %335 = vmatpush2.bf16.msra.mxu0 0
    %336 = vmatprep.subr.bf16.mxu0 0
    %337 = vmatpush2.bf16.msra.mxu0 0
    %338 = vmatprep.subr.bf16.mxu0 0
    %339 = vmatpush2.bf16.msra.mxu0 0
    %340 = vmatprep.subr.bf16.mxu0 0
    %341 = vmatpush2.bf16.msra.mxu0 0
    %342 = vmatprep.subr.bf16.mxu0 0
    %343 = vmatpush2.bf16.msra.mxu0 0
    %344 = vmatprep.subr.bf16.mxu0 0
    %345 = vmatpush2.bf16.msra.mxu0 0
    %346 = vmatprep.subr.bf16.mxu0 0
    %347 = vmatpush2.bf16.msra.mxu0 0
    %348 = vmatprep.mubr.bf16.mxu0 0
    %349 = vmatmul.mubr.bf16.gmra.mxu0 %v310
    %v350 = vpop.f32.mrf.mxu0
    %v351 = vadd.f32 0.0, %v350
    %v352 = vpop.f32.mrf.mxu0
    %v353 = vpop.f32.mrf.mxu0
    %v354 = vpop.f32.mrf.mxu0
    %355 = vdwg.mxu0
    %v357 = vsel %vm282, %v306, 0
    %v360 = vsel %vm312, %v308, 0
    %362 = vmatprep.subr.bf16.mxu0 0
    %363 = vmatpush1.bf16.msra.mxu0 0
    %364 = vmatprep.subr.bf16.mxu0 0
    %365 = vmatpush1.bf16.msra.mxu0 0
    %366 = vmatprep.subr.bf16.mxu0 0
    %367 = vmatpush1.bf16.msra.mxu0 0
    %368 = vmatprep.subr.bf16.mxu0 0
    %369 = vmatpush1.bf16.msra.mxu0 0
    %370 = vmatprep.subr.bf16.mxu0 0
    %371 = vmatpush1.bf16.msra.mxu0 0
    %372 = vmatprep.subr.bf16.mxu0 0
    %373 = vmatpush1.bf16.msra.mxu0 0
    %374 = vmatprep.subr.bf16.mxu0 0
    %375 = vmatpush1.bf16.msra.mxu0 0
    %376 = vmatprep.subr.bf16.mxu0 0
    %377 = vmatpush1.bf16.msra.mxu0 %v360
    %378 = vmatprep.subr.bf16.mxu0 0
    %379 = vmatpush2.bf16.msra.mxu0 0
    %380 = vmatprep.subr.bf16.mxu0 0
    %381 = vmatpush2.bf16.msra.mxu0 0
    %382 = vmatprep.subr.bf16.mxu0 0
    %383 = vmatpush2.bf16.msra.mxu0 0
    %384 = vmatprep.subr.bf16.mxu0 0
    %385 = vmatpush2.bf16.msra.mxu0 0
    %386 = vmatprep.subr.bf16.mxu0 0
    %387 = vmatpush2.bf16.msra.mxu0 0
    %388 = vmatprep.subr.bf16.mxu0 0
    %389 = vmatpush2.bf16.msra.mxu0 0
    %390 = vmatprep.subr.bf16.mxu0 0
    %391 = vmatpush2.bf16.msra.mxu0 0
    %392 = vmatprep.subr.bf16.mxu0 0
    %393 = vmatpush2.bf16.msra.mxu0 0
    %394 = vmatprep.mubr.bf16.mxu0 0
    %395 = vmatmul.mubr.bf16.gmra.mxu0 %v357
    %v396 = vpop.f32.mrf.mxu0
    %v397 = vadd.f32 0.0, %v396
    %v398 = vpop.f32.mrf.mxu0
    %v399 = vpop.f32.mrf.mxu0
    %v400 = vpop.f32.mrf.mxu0
    %401 = vdwg.mxu0
    %402 = vst [vmem:[#allocation7] sm:$0xff] %v351
    %403 = vst [vmem:[#allocation7 + $0x8] sm:$0xff] %v397
    // Predicated region
    $region22: #{tpu_custom_call.1} parent=1 // pred_check
      _
    $region23: #{tpu_custom_call.1} parent=1 // pred_check_branch
      %405 = sbr.rel (0) target = $region25
    $region24: #{tpu_custom_call.1} parent=1 // pred_region
      %s407 = ssub.s32 256, 256
      %408 = vsyncadd [#allocation4], %s407
      %s409 = sshll.u32 [#allocation7], 4
      %s410 = int_to_ptr.vmem [resolvable:$true] %s409
      %415 = dma.vmem_to_hbm [thread:$0]  %s410, 256, %s3, [#allocation4], 128, 128, 8
    $region25: #{tpu_custom_call.1} parent=1 // pred_fallthru
      _
    // Predicated region
    $region26: #{tpu_custom_call.1} parent=1 // pred_check
      _
    $region27: #{tpu_custom_call.1} parent=1 // pred_check_branch
      %417 = sbr.rel (0) target = $region29
    $region28: #{tpu_custom_call.1} parent=1 // pred_region
      %418 = dma.done [#allocation4], 256
    $region29: #{tpu_custom_call.1} parent=1 // pred_fallthru
      _
    %419 = vsyncpa [#allocation3], 1
    %420 = vsyncpa [#allocation6], 1
    %421 = vsyncpa [#allocation4], 1

</llo_original>
